<compile_context>
chip_gen: v5e
topology: v5e:2x2
jax: 0.10.0
libtpu: 0.0.40
codegen_flags: <defaults>
</compile_context>

<pallas_src>
import jax
import jax.numpy as jnp
from jax.experimental import pallas as pl
from jax.experimental.pallas import tpu as pltpu


def task_kernel(wt_ref, mt_ref, mask_ref, w_ref, b_ref, pre_ref, sum_acc, den_acc):
    # wt/mt: [TB, TN, D], mask: [TB, TN, 1], w: [D, 2], b: [1, 2]
    k = pl.program_id(1)

    @pl.when(k == 0)
    def _init():
        sum_acc[...] = jnp.zeros_like(sum_acc)
        den_acc[...] = jnp.zeros_like(den_acc)

    mask = mask_ref[...]                                   # [TB, TN, 1]
    diff = (wt_ref[...] - mt_ref[...]) * mask              # [TB, TN, D] (VPU, lane-broadcast)
    sum_acc[...] += jnp.sum(diff, axis=1)                  # [TB, D]  (sublane reduce over N)
    den_acc[...] += jnp.sum(mask, axis=1)                  # [TB, 1]  (sublane reduce over N)

    @pl.when(k == pl.num_programs(1) - 1)
    def _finalize():
        pooled = sum_acc[...] / (den_acc[...] + 1e-6)      # [TB, D]
        # dual-head linear readout (single tiny MXU matmul, lane-packed [TB, 2] store)
        pre_ref[...] = (jnp.dot(pooled, w_ref[...],
                                preferred_element_type=jnp.float32)
                        + b_ref[...])


def my_task_forward(wt_feat, mt_feat, mask, w, b, ddg, *, tile_n=None):
    B, N, D = wt_feat.shape

    # batch tile: [B, 2] output block needs its sublane dim to be a multiple of 8 or == B
    if B <= 8:
        tile_b = B
    else:
        assert B % 8 == 0, "batch must be a multiple of 8 when B > 8"
        tile_b = 8

    if tile_n is None:
        # ~12 MiB budget for the two streamed [TB, TN, D] inputs x 2 pipeline buffers;
        # fits the default scoped VMEM on v5e (16 MiB) and leaves headroom on v6e/v7x.
        budget = 12 * 1024 * 1024
        bytes_per_n_row = 2 * 2 * tile_b * D * 4
        tile_n = max(8, min(N, (budget // bytes_per_n_row) // 8 * 8))

    # pad N to a multiple of tile_n; padded rows have mask == 0 so they contribute nothing
    n_pad = (-N) % tile_n
    if n_pad:
        wt_feat = jnp.pad(wt_feat, ((0, 0), (0, n_pad), (0, 0)))
        mt_feat = jnp.pad(mt_feat, ((0, 0), (0, n_pad), (0, 0)))
        mask = jnp.pad(mask, ((0, 0), (0, n_pad)))
    Np = N + n_pad

    mask3 = mask.reshape(B, Np, 1)                         # N on sublanes, like wt/mt
    grid = (B // tile_b, Np // tile_n)                     # reduction (N) axis last

    cost = pl.CostEstimate(
        flops=3 * B * Np * D + 2 * B * D * 2,
        transcendentals=0,
        bytes_accessed=(2 * B * Np * D + B * Np + D * 2 + 2 + B * 2) * 4,
    )

    pre = pl.pallas_call(
        task_kernel,
        out_shape=jax.ShapeDtypeStruct((B, 2), jnp.float32),
        grid_spec=pltpu.PrefetchScalarGridSpec(
            num_scalar_prefetch=0,
            grid=grid,
            in_specs=[
                pl.BlockSpec((tile_b, tile_n, D), lambda i, k: (i, k, 0)),   # wt
                pl.BlockSpec((tile_b, tile_n, D), lambda i, k: (i, k, 0)),   # mt
                pl.BlockSpec((tile_b, tile_n, 1), lambda i, k: (i, k, 0)),   # mask
                pl.BlockSpec((D, 2), lambda i, k: (0, 0)),                   # w (resident)
                pl.BlockSpec((1, 2), lambda i, k: (0, 0)),                   # b (resident)
            ],
            out_specs=pl.BlockSpec((tile_b, 2), lambda i, k: (i, 0)),
            scratch_shapes=[
                pltpu.VMEM((tile_b, D), jnp.float32),   # masked-sum accumulator
                pltpu.VMEM((tile_b, 1), jnp.float32),   # mask-count accumulator
            ],
        ),
        compiler_params=pltpu.CompilerParams(
            dimension_semantics=("parallel", "arbitrary"),
            vmem_limit_bytes=32 * 1024 * 1024,
        ),
        cost_estimate=cost,
    )(wt_feat, mt_feat, mask3, w, b)

    # loss = MSE(pre1, ddG) + MSE(pre2, -ddG) == sum((pre - [ddg, -ddg])^2) / B
    target = jnp.concatenate([ddg, -ddg], axis=1)          # [B, 2]
    loss = jnp.sum((pre - target) ** 2) / B
    pre1 = pre[:, 0:1]
    pre2 = pre[:, 1:2]
    return loss, pre1, pre2


if __name__ == "__main__":
    B, N, D = 8, 16, 128   # batch, residues per protein, feature dim

    key = jax.random.PRNGKey(0)
    k_wt, k_mt, k_mask, k_w, k_b, k_ddg = jax.random.split(key, 6)

    wt_feat = jax.random.normal(k_wt, (B, N, D), dtype=jnp.float32)
    mt_feat = jax.random.normal(k_mt, (B, N, D), dtype=jnp.float32)
    # binary residue mask (all batches have at least one valid residue)
    mask = (jax.random.uniform(k_mask, (B, N)) > 0.3).astype(jnp.float32)
    mask = mask.at[:, 0].set(1.0)
    ddg = jax.random.normal(k_ddg, (B, 1), dtype=jnp.float32)

    # deterministic synthetic parameters for the dual-head readout
    w = jax.random.normal(k_w, (D, 2), dtype=jnp.float32) * 0.05
    b = jax.random.normal(k_b, (1, 2), dtype=jnp.float32) * 0.01

    # tile_n=8 -> two N steps, exercising the accumulator init/finalize path
    loss, pre1, pre2 = my_task_forward(wt_feat, mt_feat, mask, w, b, ddg, tile_n=8)
    jax.block_until_ready((loss, pre1, pre2))

    # sanity check against a pure-JAX reference
    diff = (wt_feat - mt_feat) * mask[:, :, None]
    pooled = diff.sum(1) / (mask.sum(1, keepdims=True) + 1e-6)
    pre_ref = pooled @ w + b
    ref_loss = (jnp.mean((pre_ref[:, 0:1] - ddg) ** 2)
                + jnp.mean((pre_ref[:, 1:2] + ddg) ** 2))
    assert jnp.allclose(loss, ref_loss, rtol=1e-5, atol=1e-5), (loss, ref_loss)
    assert jnp.allclose(pre1, pre_ref[:, 0:1], rtol=1e-5, atol=1e-5)
    assert jnp.allclose(pre2, pre_ref[:, 1:2], rtol=1e-5, atol=1e-5)

    print("KERNEL_OK")
</pallas_src>

<mosaic_0001>
module attributes {stable_mosaic.version = 11 : i64} {
  func.func @task_kernel(%arg0: i32, %arg1: i32, %arg2: memref<8x8x128xf32, #tpu.memory_space<vmem>>, %arg3: memref<8x8x128xf32, #tpu.memory_space<vmem>>, %arg4: memref<8x8x1xf32, #tpu.memory_space<vmem>>, %arg5: memref<128x2xf32, #tpu.memory_space<vmem>>, %arg6: memref<1x2xf32, #tpu.memory_space<vmem>>, %arg7: memref<8x2xf32, #tpu.memory_space<vmem>>, %arg8: memref<8x128xf32, #tpu.memory_space<vmem>>, %arg9: memref<8x1xf32, #tpu.memory_space<vmem>>) attributes {dimension_semantics = [#tpu.dimension_semantics<parallel>, #tpu.dimension_semantics<arbitrary>], iteration_bounds = array<i64: 1, 2>, scalar_prefetch = 0 : i64, scratch_operands = 2 : i64, tpu.core_type = #tpu.core_type<tc>, window_params = [{transform_indices = @transform_0, window_bounds = array<i64: 8, 8, 128>}, {transform_indices = @transform_1, window_bounds = array<i64: 8, 8, 128>}, {transform_indices = @transform_2, window_bounds = array<i64: 8, 8, 1>}, {pipeline_mode = #tpu.pipeline_mode<synchronous>, transform_indices = @transform_3, window_bounds = array<i64: 128, 2>}, {pipeline_mode = #tpu.pipeline_mode<synchronous>, transform_indices = @transform_4, window_bounds = array<i64: 1, 2>}, {transform_indices = @transform_5, window_bounds = array<i64: 8, 2>}]} {
    %c0_i32 = arith.constant 0 : i32
    %0 = arith.cmpi eq, %arg1, %c0_i32 : i32
    %1 = arith.extui %0 : i1 to i32
    %c0_i32_0 = arith.constant 0 : i32
    %2 = arith.cmpi ne, %1, %c0_i32_0 : i32
    scf.if %2 {
      %cst_19 = arith.constant 0.000000e+00 : f32
      %20 = vector.broadcast %cst_19 : f32 to vector<8x128xf32>
      %c0_20 = arith.constant 0 : index
      %c0_21 = arith.constant 0 : index
      %21 = vector.load %arg8[%c0_20, %c0_21] : memref<8x128xf32, #tpu.memory_space<vmem>>, vector<8x128xf32>
      tpu.vector_store %arg8[%c0_20, %c0_21], %20 {strides = array<i32>} : memref<8x128xf32, #tpu.memory_space<vmem>>, vector<8x128xf32>,
      %cst_22 = arith.constant 0.000000e+00 : f32
      %22 = vector.broadcast %cst_22 : f32 to vector<8x1xf32>
      %c0_23 = arith.constant 0 : index
      %c0_24 = arith.constant 0 : index
      %23 = vector.load %arg9[%c0_23, %c0_24] : memref<8x1xf32, #tpu.memory_space<vmem>>, vector<8x1xf32>
      tpu.vector_store %arg9[%c0_23, %c0_24], %22 {strides = array<i32>} : memref<8x1xf32, #tpu.memory_space<vmem>>, vector<8x1xf32>,
    } else {
    }
    %c0 = arith.constant 0 : index
    %c0_1 = arith.constant 0 : index
    %c0_2 = arith.constant 0 : index
    %3 = vector.load %arg4[%c0, %c0_1, %c0_2] : memref<8x8x1xf32, #tpu.memory_space<vmem>>, vector<8x8x1xf32>
    %c0_3 = arith.constant 0 : index
    %c0_4 = arith.constant 0 : index
    %c0_5 = arith.constant 0 : index
    %4 = vector.load %arg2[%c0_3, %c0_4, %c0_5] : memref<8x8x128xf32, #tpu.memory_space<vmem>>, vector<8x8x128xf32>
    %c0_6 = arith.constant 0 : index
    %c0_7 = arith.constant 0 : index
    %c0_8 = arith.constant 0 : index
    %5 = vector.load %arg3[%c0_6, %c0_7, %c0_8] : memref<8x8x128xf32, #tpu.memory_space<vmem>>, vector<8x8x128xf32>
    %6 = arith.subf %4, %5 : vector<8x8x128xf32>
    %7 = vector.broadcast %3 : vector<8x8x1xf32> to vector<8x8x128xf32>
    %8 = arith.mulf %6, %7 : vector<8x8x128xf32>
    %c0_9 = arith.constant 0 : index
    %c0_10 = arith.constant 0 : index
    %9 = vector.load %arg8[%c0_9, %c0_10] : memref<8x128xf32, #tpu.memory_space<vmem>>, vector<8x128xf32>
    %cst = arith.constant dense<0.000000e+00> : vector<8x128xf32>
    %10 = vector.multi_reduction <add>, %8, %cst [1] : vector<8x8x128xf32> to vector<8x128xf32>
    %11 = arith.addf %9, %10 : vector<8x128xf32>
    %c0_11 = arith.constant 0 : index
    %c0_12 = arith.constant 0 : index
    %12 = vector.load %arg8[%c0_11, %c0_12] : memref<8x128xf32, #tpu.memory_space<vmem>>, vector<8x128xf32>
    tpu.vector_store %arg8[%c0_11, %c0_12], %11 {strides = array<i32>} : memref<8x128xf32, #tpu.memory_space<vmem>>, vector<8x128xf32>,
    %c0_13 = arith.constant 0 : index
    %c0_14 = arith.constant 0 : index
    %13 = vector.load %arg9[%c0_13, %c0_14] : memref<8x1xf32, #tpu.memory_space<vmem>>, vector<8x1xf32>
    %cst_15 = arith.constant dense<0.000000e+00> : vector<8x1xf32>
    %14 = vector.multi_reduction <add>, %3, %cst_15 [1] : vector<8x8x1xf32> to vector<8x1xf32>
    %15 = arith.addf %13, %14 : vector<8x1xf32>
    %c0_16 = arith.constant 0 : index
    %c0_17 = arith.constant 0 : index
    %16 = vector.load %arg9[%c0_16, %c0_17] : memref<8x1xf32, #tpu.memory_space<vmem>>, vector<8x1xf32>
    tpu.vector_store %arg9[%c0_16, %c0_17], %15 {strides = array<i32>} : memref<8x1xf32, #tpu.memory_space<vmem>>, vector<8x1xf32>,
    %c1_i32 = arith.constant 1 : i32
    %17 = arith.cmpi eq, %arg1, %c1_i32 : i32
    %18 = arith.extui %17 : i1 to i32
    %c0_i32_18 = arith.constant 0 : i32
    %19 = arith.cmpi ne, %18, %c0_i32_18 : i32
    scf.if %19 {
      %c0_19 = arith.constant 0 : index
      %c0_20 = arith.constant 0 : index
      %20 = vector.load %arg8[%c0_19, %c0_20] : memref<8x128xf32, #tpu.memory_space<vmem>>, vector<8x128xf32>
      %c0_21 = arith.constant 0 : index
      %c0_22 = arith.constant 0 : index
      %21 = vector.load %arg9[%c0_21, %c0_22] : memref<8x1xf32, #tpu.memory_space<vmem>>, vector<8x1xf32>
      %cst_23 = arith.constant 9.99999997E-7 : f32
      %22 = vector.broadcast %cst_23 : f32 to vector<8x1xf32>
      %23 = arith.addf %21, %22 : vector<8x1xf32>
      %24 = vector.broadcast %23 : vector<8x1xf32> to vector<8x128xf32>
      %25 = arith.divf %20, %24 : vector<8x128xf32>
      %c0_24 = arith.constant 0 : index
      %c0_25 = arith.constant 0 : index
      %26 = vector.load %arg5[%c0_24, %c0_25] : memref<128x2xf32, #tpu.memory_space<vmem>>, vector<128x2xf32>
      %cst_26 = arith.constant dense<0.000000e+00> : vector<8x2xf32>
      %27 = tpu.matmul %25, %26, %cst_26 {dimension_numbers = #tpu.dot_dimension_numbers<[1], [0], [0], [1], [0, 0, 1, 1], [], []>} : vector<8x128xf32>, vector<128x2xf32>, vector<8x2xf32> -> vector<8x2xf32>
      %c0_27 = arith.constant 0 : index
      %c0_28 = arith.constant 0 : index
      %28 = vector.load %arg6[%c0_27, %c0_28] : memref<1x2xf32, #tpu.memory_space<vmem>>, vector<1x2xf32>
      %29 = vector.broadcast %28 : vector<1x2xf32> to vector<8x2xf32>
      %30 = arith.addf %27, %29 : vector<8x2xf32>
      %c0_29 = arith.constant 0 : index
      %c0_30 = arith.constant 0 : index
      %31 = vector.load %arg7[%c0_29, %c0_30] : memref<8x2xf32, #tpu.memory_space<vmem>>, vector<8x2xf32>
      tpu.vector_store %arg7[%c0_29, %c0_30], %30 {strides = array<i32>} : memref<8x2xf32, #tpu.memory_space<vmem>>, vector<8x2xf32>,
    } else {
    }
    return
  }
  func.func @transform_0(%arg0: i32, %arg1: i32) -> (i32, i32, i32) {
    %c0_i32 = arith.constant 0 : i32
    %c0_i32_0 = arith.constant 0 : i32
    return %arg0, %arg1, %c0_i32 : i32, i32, i32
  }
  func.func @transform_1(%arg0: i32, %arg1: i32) -> (i32, i32, i32) {
    %c0_i32 = arith.constant 0 : i32
    %c0_i32_0 = arith.constant 0 : i32
    return %arg0, %arg1, %c0_i32 : i32, i32, i32
  }
  func.func @transform_2(%arg0: i32, %arg1: i32) -> (i32, i32, i32) {
    %c0_i32 = arith.constant 0 : i32
    %c0_i32_0 = arith.constant 0 : i32
    return %arg0, %arg1, %c0_i32 : i32, i32, i32
  }
  func.func @transform_3(%arg0: i32, %arg1: i32) -> (i32, i32) {
    %c0_i32 = arith.constant 0 : i32
    %c0_i32_0 = arith.constant 0 : i32
    %c0_i32_1 = arith.constant 0 : i32
    return %c0_i32, %c0_i32_0 : i32, i32
  }
  func.func @transform_4(%arg0: i32, %arg1: i32) -> (i32, i32) {
    %c0_i32 = arith.constant 0 : i32
    %c0_i32_0 = arith.constant 0 : i32
    %c0_i32_1 = arith.constant 0 : i32
    return %c0_i32, %c0_i32_0 : i32, i32
  }
  func.func @transform_5(%arg0: i32, %arg1: i32) -> (i32, i32) {
    %c0_i32 = arith.constant 0 : i32
    %c0_i32_0 = arith.constant 0 : i32
    return %arg0, %c0_i32 : i32, i32
  }
}

</mosaic_0001>

<llo_original>
// kernel: tpu_custom_call.1
$region0: #{tpu_custom_call.1}
  #allocation0 [shape = 'u32[]', space=smem, size = 0x4, offset = 0x4, fixed_abs, tag = 'smem constant byte address 0x4 - core index']
  #allocation1 [shape = 'u32[72,128]{1,0:T(1,128)}', space=vmem, size = 0x9000, scoped, tag = 'internal scratch']
  #allocation2 [shape = 'f32[8,128]{1,0:T(8,128)}', space=vmem, size = 0x1000, scoped, tag = 'scratch operand']
  #allocation3 [shape = 'f32[8,1]{1,0:T(8,128)}', space=vmem, size = 0x1000, scoped, tag = 'scratch operand']
  %s0 = inlined_call_operand.vmem [shape: f32[8,16,128], index: 0, kind: input, shape index: {}]
  %s1 = inlined_call_operand.vmem [shape: f32[8,16,128], index: 1, kind: input, shape index: {}]
  %s2 = inlined_call_operand.vmem [shape: f32[8,16,1], index: 2, kind: input, shape index: {}]
  %s3 = inlined_call_operand.vmem [shape: f32[128,2], index: 3, kind: input, shape index: {}]
  %s4 = inlined_call_operand.vmem [shape: f32[1,2], index: 4, kind: input, shape index: {}]
  %s5 = inlined_call_operand.vmem [shape: f32[8,2], index: 5, kind: output, shape index: {}]
  %s6 = sld [smem:[#allocation0]]
  $region175: #{tpu_custom_call.1} parent=0
    _
  %s8 = ssub.s32 1, %s6
  %s9 = scalar_select 0, %s8, %s6
  $region1: #{tpu_custom_call.1} parent=0
    #allocation4 [shape = 'u8[65536]{0}', space=vmem, size = 0x10000, scoped, tag = 'input window, operand 0']
    #allocation5 [shape = 'u8[65536]{0}', space=vmem, size = 0x10000, scoped, tag = 'input window, operand 1']
    #allocation6 [shape = 'u8[65536]{0}', space=vmem, size = 0x10000, scoped, tag = 'input window, operand 2']
    loop: start=0, step=1, limit=4
    $region2: #{tpu_custom_call.1} parent=1 // loop_pre_header
      _
    $region3: #{tpu_custom_call.1} parent=1 // loop_header
      %s11 = sphi 0, %s15
      %p12 = scmp.ge.s32.totalorder %s11, 4
      %s18 = sphi 0, %s30
      %s19 = sphi 0, %s26
      %s20 = sphi 0, %s18
      %s21 = sphi 0, %s19
      %s22 = sphi 0, %s20
      %s23 = sphi 0, %s21
      %s35 = sphi 0, %s37
      %s38 = sphi 0, %s35
      %s39 = sphi 0, %s38
      %s55 = sphi 0, %s39
      %s63 = sphi 0, %s65
      %s66 = sphi 0, %s63
      %s67 = sphi 0, %s66
      %s83 = sphi 0, %s67
      %s91 = sphi 0, %s93
      %s94 = sphi 0, %s91
      %s95 = sphi 0, %s94
      %s111 = sphi 0, %s95
      %s115 = sphi 0, %s115
      %s117 = sphi 0, %s115
      %s118 = sphi 0, %s117
      %s132 = sphi 0, %s118
      %s136 = sphi 0, %s136
      %s138 = sphi 0, %s136
      %s139 = sphi 0, %s138
      %s153 = sphi 0, %s139
      %s159 = sphi 0, %s161
      %s162 = sphi 0, %s159
      %s163 = sphi 0, %s162
      %s179 = sphi 0, %s163
    $region4: #{tpu_custom_call.1} parent=1 // loop_header_branch
      %14 = sbr.rel (%p12) target = $region8
    $region5: #{tpu_custom_call.1} parent=1 // loop_body
      %s16 = ssub.s32 %s11, 1
      %s17 = ssub.s32 %s11, 2
      %s24 = sadd.s32 1, %s19
      %p25 = scmp.ge.s32.totalorder %s24, 2
      %s26 = scalar_select %p25, 0, %s24
      %s27 = sadd.s32 1, %s18
      %s28 = scalar_select %p25, %s27, %s18
      %p29 = scmp.ge.s32.totalorder %s28, 1
      %s30 = scalar_select %p29, 0, %s28
      %s31 = ssub.s32 %s18, %s30
      %s32 = ssub.s32 %s19, %s26
      %s33 = sor.u32 %s31, %s32
      %p34 = scmp.eq.s32.totalorder %s33, 0
      %s36 = sadd.s32 %s35, 1
      %s37 = scalar_select %p34, %s35, %s36
      %p40 = pneg %p34
      %p41 = scmp.eq.s32.totalorder %s11, 1
      %p42 = por %p40, %p41
      %p43 = scmp.ne.s32.totalorder %s35, %s38
      %p44 = scmp.eq.s32.totalorder %s11, 0
      %p45 = por %p43, %p44
      %p46 = scmp.ne.s32.totalorder %s35, %s38
      %p47 = scmp.eq.s32.totalorder %s16, 1
      %p48 = por %p46, %p47
      %p49 = scmp.ne.s32.totalorder %s38, %s39
      %p50 = scmp.eq.s32.totalorder %s16, 0
      %p51 = por %p49, %p50
      %p52 = scmp.ne.s32.totalorder %s38, %s39
      %p53 = scmp.eq.s32.totalorder %s17, 1
      %p54 = por %p52, %p53
      %p56 = scmp.ne.s32.totalorder %s39, %s55
      %p57 = scmp.eq.s32.totalorder %s17, 0
      %p58 = por %p56, %p57
      %s59 = ssub.s32 %s18, %s30
      %s60 = ssub.s32 %s19, %s26
      %s61 = sor.u32 %s59, %s60
      %p62 = scmp.eq.s32.totalorder %s61, 0
      %s64 = sadd.s32 %s63, 1
      %s65 = scalar_select %p62, %s63, %s64
      %p68 = pneg %p62
      %p69 = scmp.eq.s32.totalorder %s11, 1
      %p70 = por %p68, %p69
      %p71 = scmp.ne.s32.totalorder %s63, %s66
      %p72 = scmp.eq.s32.totalorder %s11, 0
      %p73 = por %p71, %p72
      %p74 = scmp.ne.s32.totalorder %s63, %s66
      %p75 = scmp.eq.s32.totalorder %s16, 1
      %p76 = por %p74, %p75
      %p77 = scmp.ne.s32.totalorder %s66, %s67
      %p78 = scmp.eq.s32.totalorder %s16, 0
      %p79 = por %p77, %p78
      %p80 = scmp.ne.s32.totalorder %s66, %s67
      %p81 = scmp.eq.s32.totalorder %s17, 1
      %p82 = por %p80, %p81
      %p84 = scmp.ne.s32.totalorder %s67, %s83
      %p85 = scmp.eq.s32.totalorder %s17, 0
      %p86 = por %p84, %p85
      %s87 = ssub.s32 %s18, %s30
      %s88 = ssub.s32 %s19, %s26
      %s89 = sor.u32 %s87, %s88
      %p90 = scmp.eq.s32.totalorder %s89, 0
      %s92 = sadd.s32 %s91, 1
      %s93 = scalar_select %p90, %s91, %s92
      %p96 = pneg %p90
      %p97 = scmp.eq.s32.totalorder %s11, 1
      %p98 = por %p96, %p97
      %p99 = scmp.ne.s32.totalorder %s91, %s94
      %p100 = scmp.eq.s32.totalorder %s11, 0
      %p101 = por %p99, %p100
      %p102 = scmp.ne.s32.totalorder %s91, %s94
      %p103 = scmp.eq.s32.totalorder %s16, 1
      %p104 = por %p102, %p103
      %p105 = scmp.ne.s32.totalorder %s94, %s95
      %p106 = scmp.eq.s32.totalorder %s16, 0
      %p107 = por %p105, %p106
      %p108 = scmp.ne.s32.totalorder %s94, %s95
      %p109 = scmp.eq.s32.totalorder %s17, 1
      %p110 = por %p108, %p109
      %p112 = scmp.ne.s32.totalorder %s95, %s111
      %p113 = scmp.eq.s32.totalorder %s17, 0
      %p114 = por %p112, %p113
      %s116 = sadd.s32 %s115, 1
      %p119 = scmp.eq.s32.totalorder %s11, 1
      %p120 = scmp.ne.s32.totalorder %s115, %s117
      %p121 = scmp.eq.s32.totalorder %s11, 0
      %p122 = por %p120, %p121
      %p123 = scmp.ne.s32.totalorder %s115, %s117
      %p124 = scmp.eq.s32.totalorder %s16, 1
      %p125 = por %p123, %p124
      %p126 = scmp.ne.s32.totalorder %s117, %s118
      %p127 = scmp.eq.s32.totalorder %s16, 0
      %p128 = por %p126, %p127
      %p129 = scmp.ne.s32.totalorder %s117, %s118
      %p130 = scmp.eq.s32.totalorder %s17, 1
      %p131 = por %p129, %p130
      %p133 = scmp.ne.s32.totalorder %s118, %s132
      %p134 = scmp.eq.s32.totalorder %s17, 0
      %p135 = por %p133, %p134
      %s137 = sadd.s32 %s136, 1
      %p140 = scmp.eq.s32.totalorder %s11, 1
      %p141 = scmp.ne.s32.totalorder %s136, %s138
      %p142 = scmp.eq.s32.totalorder %s11, 0
      %p143 = por %p141, %p142
      %p144 = scmp.ne.s32.totalorder %s136, %s138
      %p145 = scmp.eq.s32.totalorder %s16, 1
      %p146 = por %p144, %p145
      %p147 = scmp.ne.s32.totalorder %s138, %s139
      %p148 = scmp.eq.s32.totalorder %s16, 0
      %p149 = por %p147, %p148
      %p150 = scmp.ne.s32.totalorder %s138, %s139
      %p151 = scmp.eq.s32.totalorder %s17, 1
      %p152 = por %p150, %p151
      %p154 = scmp.ne.s32.totalorder %s139, %s153
      %p155 = scmp.eq.s32.totalorder %s17, 0
      %p156 = por %p154, %p155
      %s157 = ssub.s32 %s18, %s30
      %p158 = scmp.eq.s32.totalorder %s157, 0
      %s160 = sadd.s32 %s159, 1
      %s161 = scalar_select %p158, %s159, %s160
      %p164 = pneg %p158
      %p165 = scmp.eq.s32.totalorder %s11, 1
      %p166 = por %p164, %p165
      %p167 = scmp.ne.s32.totalorder %s159, %s162
      %p168 = scmp.eq.s32.totalorder %s11, 0
      %p169 = por %p167, %p168
      %p170 = scmp.ne.s32.totalorder %s159, %s162
      %p171 = scmp.eq.s32.totalorder %s16, 1
      %p172 = por %p170, %p171
      %p173 = scmp.ne.s32.totalorder %s162, %s163
      %p174 = scmp.eq.s32.totalorder %s16, 0
      %p175 = por %p173, %p174
      %p176 = scmp.ne.s32.totalorder %s162, %s163
      %p177 = scmp.eq.s32.totalorder %s17, 1
      %p178 = por %p176, %p177
      %p180 = scmp.ne.s32.totalorder %s163, %s179
      %p181 = scmp.eq.s32.totalorder %s17, 0
      %p182 = por %p180, %p181
      %p183 = scmp.le.s32.totalorder 1, %s11
      %p184 = scmp.lt.s32.totalorder %s11, 3
      %p185 = pnand %p183, %p184
      %p186 = pneg %p185
      // Predicated region
      $region9: #{tpu_custom_call.1} parent=5 // pred_check
        _
      $region10: #{tpu_custom_call.1} parent=5 // pred_check_branch
        %188 = sbr.rel (%p185) target = $region12
      $region11: #{tpu_custom_call.1} parent=5 // pred_region
        %s189 = ssub.s32 %s11, 1
        // Predicated region
        $region13: #{tpu_custom_call.1} parent=11 // pred_check
          %p190 = pneg %p128
        $region14: #{tpu_custom_call.1} parent=11 // pred_check_branch
          %192 = sbr.rel (%p190) target = $region16
        $region15: #{tpu_custom_call.1} parent=11 // pred_region
          _
        $region16: #{tpu_custom_call.1} parent=11 // pred_fallthru
          _
        // Predicated region
        $region17: #{tpu_custom_call.1} parent=11 // pred_check
          %p193 = pneg %p149
        $region18: #{tpu_custom_call.1} parent=11 // pred_check_branch
          %195 = sbr.rel (%p193) target = $region20
        $region19: #{tpu_custom_call.1} parent=11 // pred_region
          _
        $region20: #{tpu_custom_call.1} parent=11 // pred_fallthru
          _
      $region12: #{tpu_custom_call.1} parent=5 // pred_fallthru
        _
      %p196 = scmp.lt.s32.totalorder %s11, 2
      // Predicated region
      $region21: #{tpu_custom_call.1} parent=5 // pred_check
        %p197 = pneg %p196
      $region22: #{tpu_custom_call.1} parent=5 // pred_check_branch
        %199 = sbr.rel (%p197) target = $region24
      $region23: #{tpu_custom_call.1} parent=5 // pred_region
        // Predicated region
        $region25: #{tpu_custom_call.1} parent=23 // pred_check
          %p200 = pneg %p45
        $region26: #{tpu_custom_call.1} parent=23 // pred_check_branch
          %202 = sbr.rel (%p200) target = $region28
        $region27: #{tpu_custom_call.1} parent=23 // pred_region
          %s203 = sand.u32 %s35, 1
          %s204 = sand.u32 %s35, 1
          %s205 = smul.addr %s204, 64
          %s206 = scalar_lea.vmem [#allocation4], %s205
          %s207 = smul.u32 8, %s18
          %s208 = smul.addr %s207, 2
          %s209 = sadd.s32 %s19, %s208
          %s210 = smul.addr %s209, 8
          %s211 = scalar_lea.vmem %s0, %s210
          // Predicated region
          $region29: #{tpu_custom_call.1} parent=27 // pred_check
            _
          $region30: #{tpu_custom_call.1} parent=27 // pred_check_branch
            %213 = sbr.rel (0) target = $region32
          $region31: #{tpu_custom_call.1} parent=27 // pred_region
            // Predicated region
            $region33: #{tpu_custom_call.1} parent=31 // pred_check
              _
            $region34: #{tpu_custom_call.1} parent=31 // pred_check_branch
              %215 = sbr.rel (0) target = $region36
            $region35: #{tpu_custom_call.1} parent=31 // pred_region
              // Predicated region
              $region48: #{tpu_custom_call.1} parent=35 // pred_check
                _
              $region49: #{tpu_custom_call.1} parent=35 // pred_check_branch
                %245 = sbr.rel (0) target = $region51
              $region50: #{tpu_custom_call.1} parent=35 // pred_region
                loop: start=0, step=1, limit=1
                $region52: #{tpu_custom_call.1} parent=50 // loop_pre_header
                  _
                $region53: #{tpu_custom_call.1} parent=50 // loop_header
                  %s247 = sphi 0, %s251
                  %p248 = scmp.ge.s32.totalorder %s247, 1
                  %s252 = sphi %s211, %s211
                  %s253 = sphi %s206, %s206
                $region54: #{tpu_custom_call.1} parent=50 // loop_header_branch
                  %250 = sbr.rel (%p248) target = $region58
                $region55: #{tpu_custom_call.1} parent=50 // loop_body
                  %v254 = vld [vmem:[%s252] sm:$0xff]
                  %255 = vst [vmem:[%s253] sm:$0xff] %v254
                  %v256 = vld [vmem:[%s252 + $0x10] sm:$0xff]
                  %257 = vst [vmem:[%s253 + $0x8] sm:$0xff] %v256
                  %v258 = vld [vmem:[%s252 + $0x20] sm:$0xff]
                  %259 = vst [vmem:[%s253 + $0x10] sm:$0xff] %v258
                  %v260 = vld [vmem:[%s252 + $0x30] sm:$0xff]
                  %261 = vst [vmem:[%s253 + $0x18] sm:$0xff] %v260
                  %v262 = vld [vmem:[%s252 + $0x40] sm:$0xff]
                  %263 = vst [vmem:[%s253 + $0x20] sm:$0xff] %v262
                  %v264 = vld [vmem:[%s252 + $0x50] sm:$0xff]
                  %265 = vst [vmem:[%s253 + $0x28] sm:$0xff] %v264
                  %v266 = vld [vmem:[%s252 + $0x60] sm:$0xff]
                  %267 = vst [vmem:[%s253 + $0x30] sm:$0xff] %v266
                  %v268 = vld [vmem:[%s252 + $0x70] sm:$0xff]
                  %269 = vst [vmem:[%s253 + $0x38] sm:$0xff] %v268
                $region56: #{tpu_custom_call.1} parent=50 // loop_footer
                  %s251 = sadd.s32 1, %s247
                $region57: #{tpu_custom_call.1} parent=50 // loop_footer_branch
                  %246 = sbr.rel target = $region53
                $region58: #{tpu_custom_call.1} parent=50 // loop_exit
                  _
              $region51: #{tpu_custom_call.1} parent=35 // pred_fallthru
                _
              // Predicated region
              $region59: #{tpu_custom_call.1} parent=35 // pred_check
                _
              $region60: #{tpu_custom_call.1} parent=35 // pred_check_branch
                %271 = sbr.rel target = $region62
              $region61: #{tpu_custom_call.1} parent=35 // pred_region
                _
              $region62: #{tpu_custom_call.1} parent=35 // pred_fallthru
                _
            $region36: #{tpu_custom_call.1} parent=31 // pred_fallthru
              _
            // Predicated region
            $region37: #{tpu_custom_call.1} parent=31 // pred_check
              _
            $region38: #{tpu_custom_call.1} parent=31 // pred_check_branch
              %217 = sbr.rel target = $region40
            $region39: #{tpu_custom_call.1} parent=31 // pred_region
              %s219 = ssub.s32 256, 1
              loop: start=0, step=1, limit=1
              $region41: #{tpu_custom_call.1} parent=39 // loop_pre_header
                _
              $region42: #{tpu_custom_call.1} parent=39 // loop_header
                %s221 = sphi 0, %s225
                %p222 = scmp.ge.s32.totalorder %s221, 1
                %s226 = sphi %s211, %s211
                %s227 = sphi %s206, %s206
              $region43: #{tpu_custom_call.1} parent=39 // loop_header_branch
                %224 = sbr.rel (%p222) target = $region47
              $region44: #{tpu_custom_call.1} parent=39 // loop_body
                %v228 = vld [vmem:[%s226] sm:%s219]
                %229 = vst [vmem:[%s227] sm:%s219] %v228
                %v230 = vld [vmem:[%s226 + $0x10] sm:%s219]
                %231 = vst [vmem:[%s227 + $0x8] sm:%s219] %v230
                %v232 = vld [vmem:[%s226 + $0x20] sm:%s219]
                %233 = vst [vmem:[%s227 + $0x10] sm:%s219] %v232
                %v234 = vld [vmem:[%s226 + $0x30] sm:%s219]
                %235 = vst [vmem:[%s227 + $0x18] sm:%s219] %v234
                %v236 = vld [vmem:[%s226 + $0x40] sm:%s219]
                %237 = vst [vmem:[%s227 + $0x20] sm:%s219] %v236
                %v238 = vld [vmem:[%s226 + $0x50] sm:%s219]
                %239 = vst [vmem:[%s227 + $0x28] sm:%s219] %v238
                %v240 = vld [vmem:[%s226 + $0x60] sm:%s219]
                %241 = vst [vmem:[%s227 + $0x30] sm:%s219] %v240
                %v242 = vld [vmem:[%s226 + $0x70] sm:%s219]
                %243 = vst [vmem:[%s227 + $0x38] sm:%s219] %v242
              $region45: #{tpu_custom_call.1} parent=39 // loop_footer
                %s225 = sadd.s32 1, %s221
              $region46: #{tpu_custom_call.1} parent=39 // loop_footer_branch
                %220 = sbr.rel target = $region42
              $region47: #{tpu_custom_call.1} parent=39 // loop_exit
                _
            $region40: #{tpu_custom_call.1} parent=31 // pred_fallthru
              _
          $region32: #{tpu_custom_call.1} parent=27 // pred_fallthru
            _
          %272 = vnop
        $region28: #{tpu_custom_call.1} parent=23 // pred_fallthru
          _
        // Predicated region
        $region63: #{tpu_custom_call.1} parent=23 // pred_check
          %p273 = pneg %p73
        $region64: #{tpu_custom_call.1} parent=23 // pred_check_branch
          %275 = sbr.rel (%p273) target = $region66
        $region65: #{tpu_custom_call.1} parent=23 // pred_region
          %s276 = sand.u32 %s63, 1
          %s277 = sand.u32 %s63, 1
          %s278 = smul.addr %s277, 64
          %s279 = scalar_lea.vmem [#allocation5], %s278
          %s280 = smul.u32 8, %s18
          %s281 = smul.addr %s280, 2
          %s282 = sadd.s32 %s19, %s281
          %s283 = smul.addr %s282, 8
          %s284 = scalar_lea.vmem %s1, %s283
          // Predicated region
          $region67: #{tpu_custom_call.1} parent=65 // pred_check
            _
          $region68: #{tpu_custom_call.1} parent=65 // pred_check_branch
            %286 = sbr.rel (0) target = $region70
          $region69: #{tpu_custom_call.1} parent=65 // pred_region
            // Predicated region
            $region71: #{tpu_custom_call.1} parent=69 // pred_check
              _
            $region72: #{tpu_custom_call.1} parent=69 // pred_check_branch
              %288 = sbr.rel (0) target = $region74
            $region73: #{tpu_custom_call.1} parent=69 // pred_region
              // Predicated region
              $region86: #{tpu_custom_call.1} parent=73 // pred_check
                _
              $region87: #{tpu_custom_call.1} parent=73 // pred_check_branch
                %318 = sbr.rel (0) target = $region89
              $region88: #{tpu_custom_call.1} parent=73 // pred_region
                loop: start=0, step=1, limit=1
                $region90: #{tpu_custom_call.1} parent=88 // loop_pre_header
                  _
                $region91: #{tpu_custom_call.1} parent=88 // loop_header
                  %s320 = sphi 0, %s324
                  %p321 = scmp.ge.s32.totalorder %s320, 1
                  %s325 = sphi %s284, %s284
                  %s326 = sphi %s279, %s279
                $region92: #{tpu_custom_call.1} parent=88 // loop_header_branch
                  %323 = sbr.rel (%p321) target = $region96
                $region93: #{tpu_custom_call.1} parent=88 // loop_body
                  %v327 = vld [vmem:[%s325] sm:$0xff]
                  %328 = vst [vmem:[%s326] sm:$0xff] %v327
                  %v329 = vld [vmem:[%s325 + $0x10] sm:$0xff]
                  %330 = vst [vmem:[%s326 + $0x8] sm:$0xff] %v329
                  %v331 = vld [vmem:[%s325 + $0x20] sm:$0xff]
                  %332 = vst [vmem:[%s326 + $0x10] sm:$0xff] %v331
                  %v333 = vld [vmem:[%s325 + $0x30] sm:$0xff]
                  %334 = vst [vmem:[%s326 + $0x18] sm:$0xff] %v333
                  %v335 = vld [vmem:[%s325 + $0x40] sm:$0xff]
                  %336 = vst [vmem:[%s326 + $0x20] sm:$0xff] %v335
                  %v337 = vld [vmem:[%s325 + $0x50] sm:$0xff]
                  %338 = vst [vmem:[%s326 + $0x28] sm:$0xff] %v337
                  %v339 = vld [vmem:[%s325 + $0x60] sm:$0xff]
                  %340 = vst [vmem:[%s326 + $0x30] sm:$0xff] %v339
                  %v341 = vld [vmem:[%s325 + $0x70] sm:$0xff]
                  %342 = vst [vmem:[%s326 + $0x38] sm:$0xff] %v341
                $region94: #{tpu_custom_call.1} parent=88 // loop_footer
                  %s324 = sadd.s32 1, %s320
                $region95: #{tpu_custom_call.1} parent=88 // loop_footer_branch
                  %319 = sbr.rel target = $region91
                $region96: #{tpu_custom_call.1} parent=88 // loop_exit
                  _
              $region89: #{tpu_custom_call.1} parent=73 // pred_fallthru
                _
              // Predicated region
              $region97: #{tpu_custom_call.1} parent=73 // pred_check
                _
              $region98: #{tpu_custom_call.1} parent=73 // pred_check_branch
                %344 = sbr.rel target = $region100
              $region99: #{tpu_custom_call.1} parent=73 // pred_region
                _
              $region100: #{tpu_custom_call.1} parent=73 // pred_fallthru
                _
            $region74: #{tpu_custom_call.1} parent=69 // pred_fallthru
              _
            // Predicated region
            $region75: #{tpu_custom_call.1} parent=69 // pred_check
              _
            $region76: #{tpu_custom_call.1} parent=69 // pred_check_branch
              %290 = sbr.rel target = $region78
            $region77: #{tpu_custom_call.1} parent=69 // pred_region
              %s292 = ssub.s32 256, 1
              loop: start=0, step=1, limit=1
              $region79: #{tpu_custom_call.1} parent=77 // loop_pre_header
                _
              $region80: #{tpu_custom_call.1} parent=77 // loop_header
                %s294 = sphi 0, %s298
                %p295 = scmp.ge.s32.totalorder %s294, 1
                %s299 = sphi %s284, %s284
                %s300 = sphi %s279, %s279
              $region81: #{tpu_custom_call.1} parent=77 // loop_header_branch
                %297 = sbr.rel (%p295) target = $region85
              $region82: #{tpu_custom_call.1} parent=77 // loop_body
                %v301 = vld [vmem:[%s299] sm:%s292]
                %302 = vst [vmem:[%s300] sm:%s292] %v301
                %v303 = vld [vmem:[%s299 + $0x10] sm:%s292]
                %304 = vst [vmem:[%s300 + $0x8] sm:%s292] %v303
                %v305 = vld [vmem:[%s299 + $0x20] sm:%s292]
                %306 = vst [vmem:[%s300 + $0x10] sm:%s292] %v305
                %v307 = vld [vmem:[%s299 + $0x30] sm:%s292]
                %308 = vst [vmem:[%s300 + $0x18] sm:%s292] %v307
                %v309 = vld [vmem:[%s299 + $0x40] sm:%s292]
                %310 = vst [vmem:[%s300 + $0x20] sm:%s292] %v309
                %v311 = vld [vmem:[%s299 + $0x50] sm:%s292]
                %312 = vst [vmem:[%s300 + $0x28] sm:%s292] %v311
                %v313 = vld [vmem:[%s299 + $0x60] sm:%s292]
                %314 = vst [vmem:[%s300 + $0x30] sm:%s292] %v313
                %v315 = vld [vmem:[%s299 + $0x70] sm:%s292]
                %316 = vst [vmem:[%s300 + $0x38] sm:%s292] %v315
              $region83: #{tpu_custom_call.1} parent=77 // loop_footer
                %s298 = sadd.s32 1, %s294
              $region84: #{tpu_custom_call.1} parent=77 // loop_footer_branch
                %293 = sbr.rel target = $region80
              $region85: #{tpu_custom_call.1} parent=77 // loop_exit
                _
            $region78: #{tpu_custom_call.1} parent=69 // pred_fallthru
              _
          $region70: #{tpu_custom_call.1} parent=65 // pred_fallthru
            _
          %345 = vnop
        $region66: #{tpu_custom_call.1} parent=23 // pred_fallthru
          _
        // Predicated region
        $region101: #{tpu_custom_call.1} parent=23 // pred_check
          %p346 = pneg %p101
        $region102: #{tpu_custom_call.1} parent=23 // pred_check_branch
          %348 = sbr.rel (%p346) target = $region104
        $region103: #{tpu_custom_call.1} parent=23 // pred_region
          %s349 = sand.u32 %s91, 1
          %s350 = sand.u32 %s91, 1
          %s351 = smul.addr %s350, 64
          %s352 = scalar_lea.vmem [#allocation6], %s351
          %s353 = smul.u32 8, %s18
          %s354 = smul.addr %s353, 2
          %s355 = sadd.s32 %s19, %s354
          %s356 = smul.addr %s355, 8
          %s357 = scalar_lea.vmem %s2, %s356
          // Predicated region
          $region105: #{tpu_custom_call.1} parent=103 // pred_check
            _
          $region106: #{tpu_custom_call.1} parent=103 // pred_check_branch
            %359 = sbr.rel (0) target = $region108
          $region107: #{tpu_custom_call.1} parent=103 // pred_region
            // Predicated region
            $region109: #{tpu_custom_call.1} parent=107 // pred_check
              _
            $region110: #{tpu_custom_call.1} parent=107 // pred_check_branch
              %361 = sbr.rel (0) target = $region112
            $region111: #{tpu_custom_call.1} parent=107 // pred_region
              // Predicated region
              $region124: #{tpu_custom_call.1} parent=111 // pred_check
                _
              $region125: #{tpu_custom_call.1} parent=111 // pred_check_branch
                %391 = sbr.rel (0) target = $region127
              $region126: #{tpu_custom_call.1} parent=111 // pred_region
                loop: start=0, step=1, limit=1
                $region128: #{tpu_custom_call.1} parent=126 // loop_pre_header
                  _
                $region129: #{tpu_custom_call.1} parent=126 // loop_header
                  %s393 = sphi 0, %s397
                  %p394 = scmp.ge.s32.totalorder %s393, 1
                  %s398 = sphi %s357, %s357
                  %s399 = sphi %s352, %s352
                $region130: #{tpu_custom_call.1} parent=126 // loop_header_branch
                  %396 = sbr.rel (%p394) target = $region134
                $region131: #{tpu_custom_call.1} parent=126 // loop_body
                  %v400 = vld [vmem:[%s398] sm:$0xff]
                  %401 = vst [vmem:[%s399] sm:$0xff] %v400
                  %v402 = vld [vmem:[%s398 + $0x10] sm:$0xff]
                  %403 = vst [vmem:[%s399 + $0x8] sm:$0xff] %v402
                  %v404 = vld [vmem:[%s398 + $0x20] sm:$0xff]
                  %405 = vst [vmem:[%s399 + $0x10] sm:$0xff] %v404
                  %v406 = vld [vmem:[%s398 + $0x30] sm:$0xff]
                  %407 = vst [vmem:[%s399 + $0x18] sm:$0xff] %v406
                  %v408 = vld [vmem:[%s398 + $0x40] sm:$0xff]
                  %409 = vst [vmem:[%s399 + $0x20] sm:$0xff] %v408
                  %v410 = vld [vmem:[%s398 + $0x50] sm:$0xff]
                  %411 = vst [vmem:[%s399 + $0x28] sm:$0xff] %v410
                  %v412 = vld [vmem:[%s398 + $0x60] sm:$0xff]
                  %413 = vst [vmem:[%s399 + $0x30] sm:$0xff] %v412
                  %v414 = vld [vmem:[%s398 + $0x70] sm:$0xff]
                  %415 = vst [vmem:[%s399 + $0x38] sm:$0xff] %v414
                $region132: #{tpu_custom_call.1} parent=126 // loop_footer
                  %s397 = sadd.s32 1, %s393
                $region133: #{tpu_custom_call.1} parent=126 // loop_footer_branch
                  %392 = sbr.rel target = $region129
                $region134: #{tpu_custom_call.1} parent=126 // loop_exit
                  _
              $region127: #{tpu_custom_call.1} parent=111 // pred_fallthru
                _
              // Predicated region
              $region135: #{tpu_custom_call.1} parent=111 // pred_check
                _
              $region136: #{tpu_custom_call.1} parent=111 // pred_check_branch
                %417 = sbr.rel target = $region138
              $region137: #{tpu_custom_call.1} parent=111 // pred_region
                _
              $region138: #{tpu_custom_call.1} parent=111 // pred_fallthru
                _
            $region112: #{tpu_custom_call.1} parent=107 // pred_fallthru
              _
            // Predicated region
            $region113: #{tpu_custom_call.1} parent=107 // pred_check
              _
            $region114: #{tpu_custom_call.1} parent=107 // pred_check_branch
              %363 = sbr.rel target = $region116
            $region115: #{tpu_custom_call.1} parent=107 // pred_region
              %s365 = ssub.s32 256, 1
              loop: start=0, step=1, limit=1
              $region117: #{tpu_custom_call.1} parent=115 // loop_pre_header
                _
              $region118: #{tpu_custom_call.1} parent=115 // loop_header
                %s367 = sphi 0, %s371
                %p368 = scmp.ge.s32.totalorder %s367, 1
                %s372 = sphi %s357, %s357
                %s373 = sphi %s352, %s352
              $region119: #{tpu_custom_call.1} parent=115 // loop_header_branch
                %370 = sbr.rel (%p368) target = $region123
              $region120: #{tpu_custom_call.1} parent=115 // loop_body
                %v374 = vld [vmem:[%s372] sm:%s365]
                %375 = vst [vmem:[%s373] sm:%s365] %v374
                %v376 = vld [vmem:[%s372 + $0x10] sm:%s365]
                %377 = vst [vmem:[%s373 + $0x8] sm:%s365] %v376
                %v378 = vld [vmem:[%s372 + $0x20] sm:%s365]
                %379 = vst [vmem:[%s373 + $0x10] sm:%s365] %v378
                %v380 = vld [vmem:[%s372 + $0x30] sm:%s365]
                %381 = vst [vmem:[%s373 + $0x18] sm:%s365] %v380
                %v382 = vld [vmem:[%s372 + $0x40] sm:%s365]
                %383 = vst [vmem:[%s373 + $0x20] sm:%s365] %v382
                %v384 = vld [vmem:[%s372 + $0x50] sm:%s365]
                %385 = vst [vmem:[%s373 + $0x28] sm:%s365] %v384
                %v386 = vld [vmem:[%s372 + $0x60] sm:%s365]
                %387 = vst [vmem:[%s373 + $0x30] sm:%s365] %v386
                %v388 = vld [vmem:[%s372 + $0x70] sm:%s365]
                %389 = vst [vmem:[%s373 + $0x38] sm:%s365] %v388
              $region121: #{tpu_custom_call.1} parent=115 // loop_footer
                %s371 = sadd.s32 1, %s367
              $region122: #{tpu_custom_call.1} parent=115 // loop_footer_branch
                %366 = sbr.rel target = $region118
              $region123: #{tpu_custom_call.1} parent=115 // loop_exit
                _
            $region116: #{tpu_custom_call.1} parent=107 // pred_fallthru
              _
          $region108: #{tpu_custom_call.1} parent=103 // pred_fallthru
            _
          %418 = vnop
        $region104: #{tpu_custom_call.1} parent=23 // pred_fallthru
          _
      $region24: #{tpu_custom_call.1} parent=5 // pred_fallthru
        _
      %p419 = scmp.le.s32.totalorder 1, %s11
      %p420 = scmp.lt.s32.totalorder %s11, 3
      %p421 = pnand %p419, %p420
      %p422 = pneg %p421
      // Predicated region
      $region139: #{tpu_custom_call.1} parent=5 // pred_check
        _
      $region140: #{tpu_custom_call.1} parent=5 // pred_check_branch
        %424 = sbr.rel (%p421) target = $region142
      $region141: #{tpu_custom_call.1} parent=5 // pred_region
        %s425 = ssub.s32 %s11, 1
        %s426 = sand.u32 %s38, 1
        %s427 = sand.u32 %s38, 1
        %s428 = smul.addr %s427, 64
        %s429 = scalar_lea.vmem [#allocation4], %s428
        // Predicated region
        $region143: #{tpu_custom_call.1} parent=141 // pred_check
          %p430 = pneg %p51
        $region144: #{tpu_custom_call.1} parent=141 // pred_check_branch
          %432 = sbr.rel (%p430) target = $region146
        $region145: #{tpu_custom_call.1} parent=141 // pred_region
          _
        $region146: #{tpu_custom_call.1} parent=141 // pred_fallthru
          _
        %s433 = sand.u32 %s66, 1
        %s434 = sand.u32 %s66, 1
        %s435 = smul.addr %s434, 64
        %s436 = scalar_lea.vmem [#allocation5], %s435
        // Predicated region
        $region147: #{tpu_custom_call.1} parent=141 // pred_check
          %p437 = pneg %p79
        $region148: #{tpu_custom_call.1} parent=141 // pred_check_branch
          %439 = sbr.rel (%p437) target = $region150
        $region149: #{tpu_custom_call.1} parent=141 // pred_region
          _
        $region150: #{tpu_custom_call.1} parent=141 // pred_fallthru
          _
        %s440 = sand.u32 %s94, 1
        %s441 = sand.u32 %s94, 1
        %s442 = smul.addr %s441, 64
        %s443 = scalar_lea.vmem [#allocation6], %s442
        // Predicated region
        $region151: #{tpu_custom_call.1} parent=141 // pred_check
          %p444 = pneg %p107
        $region152: #{tpu_custom_call.1} parent=141 // pred_check_branch
          %446 = sbr.rel (%p444) target = $region154
        $region153: #{tpu_custom_call.1} parent=141 // pred_region
          _
        $region154: #{tpu_custom_call.1} parent=141 // pred_fallthru
          _
        %s447 = sand.u32 %s38, 1
        %s448 = sand.u32 %s38, 1
        %s449 = smul.addr %s448, 64
        %s450 = scalar_lea.vmem [#allocation4], %s449
        %p451 = pneg %p51
        %p452 = pneg %p48
        %s453 = sand.u32 %s66, 1
        %s454 = sand.u32 %s66, 1
        %s455 = smul.addr %s454, 64
        %s456 = scalar_lea.vmem [#allocation5], %s455
        %p457 = pneg %p79
        %p458 = pneg %p76
        %s459 = sand.u32 %s94, 1
        %s460 = sand.u32 %s94, 1
        %s461 = smul.addr %s460, 64
        %s462 = scalar_lea.vmem [#allocation6], %s461
        %p463 = pneg %p107
        %p464 = pneg %p104
        %p465 = pneg %p128
        %p466 = pneg %p125
        %p467 = pneg %p149
        %p468 = pneg %p146
        %p469 = pneg %p175
        %p470 = pneg %p172
        %p471 = scmp.lt.s32.totalorder %s20, 0
        %s472 = scalar_select %p471, %s20, 0
        %s473 = smul.addr %s472, 8
        %s474 = scalar_lea.vmem %s5, %s473
        %s475 = smul.u32 8, %s20
        %s476 = smul.u32 8, %s20
        %s477 = smul.u32 8, %s20
        %p478 = scmp.lt.s32.totalorder %s20, 0
        %s479 = scalar_select %p478, %s20, 0
        %s480 = smul.addr %s479, 8
        %s481 = scalar_lea.vmem %s5, %s480
        %p482 = scmp.eq.s32.totalorder %s21, 0
        // Predicated region
        $region155: #{tpu_custom_call.1} parent=141 // pred_check
          %p483 = pneg %p482
        $region156: #{tpu_custom_call.1} parent=141 // pred_check_branch
          %485 = sbr.rel (%p483) target = $region158
        $region157: #{tpu_custom_call.1} parent=141 // pred_region
          %486 = vst [vmem:[#allocation2] sm:$0xff] 0.0
          %vm487 = vcmask 7168
          %488 = vst.msk [vmem:[#allocation3] sm:$0xff] %vm487, 0.0
        $region158: #{tpu_custom_call.1} parent=141 // pred_fallthru
          _
        %v489 = vld [vmem:[%s443] sm:$0xff]
        %v490 = vld [vmem:[%s443 + $0x8] sm:$0xff]
        %v491 = vld [vmem:[%s443 + $0x10] sm:$0xff]
        %v492 = vld [vmem:[%s443 + $0x18] sm:$0xff]
        %v493 = vld [vmem:[%s443 + $0x20] sm:$0xff]
        %v494 = vld [vmem:[%s443 + $0x28] sm:$0xff]
        %v495 = vld [vmem:[%s443 + $0x30] sm:$0xff]
        %v496 = vld [vmem:[%s443 + $0x38] sm:$0xff]
        %v497 = vld [vmem:[%s429] sm:$0xff]
        %v498 = vld [vmem:[%s429 + $0x8] sm:$0xff]
        %v499 = vld [vmem:[%s429 + $0x10] sm:$0xff]
        %v500 = vld [vmem:[%s429 + $0x18] sm:$0xff]
        %v501 = vld [vmem:[%s429 + $0x20] sm:$0xff]
        %v502 = vld [vmem:[%s429 + $0x28] sm:$0xff]
        %v503 = vld [vmem:[%s429 + $0x30] sm:$0xff]
        %v504 = vld [vmem:[%s429 + $0x38] sm:$0xff]
        %v505 = vld [vmem:[%s436] sm:$0xff]
        %v506 = vld [vmem:[%s436 + $0x8] sm:$0xff]
        %v507 = vld [vmem:[%s436 + $0x10] sm:$0xff]
        %v508 = vld [vmem:[%s436 + $0x18] sm:$0xff]
        %v509 = vld [vmem:[%s436 + $0x20] sm:$0xff]
        %v510 = vld [vmem:[%s436 + $0x28] sm:$0xff]
        %v511 = vld [vmem:[%s436 + $0x30] sm:$0xff]
        %v512 = vld [vmem:[%s436 + $0x38] sm:$0xff]
        %v513 = vsub.f32 %v497, %v505
        %v514 = vsub.f32 %v498, %v506
        %v515 = vsub.f32 %v499, %v507
        %v516 = vsub.f32 %v500, %v508
        %v517 = vsub.f32 %v501, %v509
        %v518 = vsub.f32 %v502, %v510
        %v519 = vsub.f32 %v503, %v511
        %v520 = vsub.f32 %v504, %v512
        %522 = vset.pattern.permute.xlu0 0
        %523 = vperm.xlu0 %522, %v489
        %v524 = vpop.permute.xlu0 %523
        %527 = vset.pattern.permute.xlu0 0
        %528 = vperm.xlu0 %527, %v490
        %v529 = vpop.permute.xlu0 %528
        %532 = vset.pattern.permute.xlu0 0
        %533 = vperm.xlu0 %532, %v491
        %v534 = vpop.permute.xlu0 %533
        %537 = vset.pattern.permute.xlu0 0
        %538 = vperm.xlu0 %537, %v492
        %v539 = vpop.permute.xlu0 %538
        %542 = vset.pattern.permute.xlu0 0
        %543 = vperm.xlu0 %542, %v493
        %v544 = vpop.permute.xlu0 %543
        %547 = vset.pattern.permute.xlu0 0
        %548 = vperm.xlu0 %547, %v494
        %v549 = vpop.permute.xlu0 %548
        %552 = vset.pattern.permute.xlu0 0
        %553 = vperm.xlu0 %552, %v495
        %v554 = vpop.permute.xlu0 %553
        %557 = vset.pattern.permute.xlu0 0
        %558 = vperm.xlu0 %557, %v496
        %v559 = vpop.permute.xlu0 %558
        %v561 = vmul.f32 %v513, %v524
        %v562 = vmul.f32 %v514, %v529
        %v563 = vmul.f32 %v515, %v534
        %v564 = vmul.f32 %v516, %v539
        %v565 = vmul.f32 %v517, %v544
        %v566 = vmul.f32 %v518, %v549
        %v567 = vmul.f32 %v519, %v554
        %v568 = vmul.f32 %v520, %v559
        %v569 = vld [vmem:[#allocation2] sm:$0xff]
        %v570 = vrot.slane %v561, 4
        %v571 = vadd.f32 %v561, %v570
        %v572 = vrot.slane %v571, 2
        %v573 = vadd.f32 %v571, %v572
        %v574 = vrot.slane %v573, 1
        %v575 = vadd.f32 %v573, %v574
        %v576 = vrot.slane %v562, 4
        %v577 = vadd.f32 %v562, %v576
        %v578 = vrot.slane %v577, 2
        %v579 = vadd.f32 %v577, %v578
        %v580 = vrot.slane %v579, 1
        %v581 = vadd.f32 %v579, %v580
        %v582 = vrot.slane %v563, 4
        %v583 = vadd.f32 %v563, %v582
        %v584 = vrot.slane %v583, 2
        %v585 = vadd.f32 %v583, %v584
        %v586 = vrot.slane %v585, 1
        %v587 = vadd.f32 %v585, %v586
        %v588 = vrot.slane %v564, 4
        %v589 = vadd.f32 %v564, %v588
        %v590 = vrot.slane %v589, 2
        %v591 = vadd.f32 %v589, %v590
        %v592 = vrot.slane %v591, 1
        %v593 = vadd.f32 %v591, %v592
        %v594 = vrot.slane %v565, 4
        %v595 = vadd.f32 %v565, %v594
        %v596 = vrot.slane %v595, 2
        %v597 = vadd.f32 %v595, %v596
        %v598 = vrot.slane %v597, 1
        %v599 = vadd.f32 %v597, %v598
        %v600 = vrot.slane %v566, 4
        %v601 = vadd.f32 %v566, %v600
        %v602 = vrot.slane %v601, 2
        %v603 = vadd.f32 %v601, %v602
        %v604 = vrot.slane %v603, 1
        %v605 = vadd.f32 %v603, %v604
        %v606 = vrot.slane %v567, 4
        %v607 = vadd.f32 %v567, %v606
        %v608 = vrot.slane %v607, 2
        %v609 = vadd.f32 %v607, %v608
        %v610 = vrot.slane %v609, 1
        %v611 = vadd.f32 %v609, %v610
        %v612 = vrot.slane %v568, 4
        %v613 = vadd.f32 %v568, %v612
        %v614 = vrot.slane %v613, 2
        %v615 = vadd.f32 %v613, %v614
        %v616 = vrot.slane %v615, 1
        %v617 = vadd.f32 %v615, %v616
        %vm626 = vcmask 1041409
        %v627 = vsel %vm626, %v581, %v575
        %vm628 = vcmask 1042434
        %v629 = vsel %vm628, %v587, %v627
        %vm630 = vcmask 1043459
        %v631 = vsel %vm630, %v593, %v629
        %vm632 = vcmask 1044484
        %v633 = vsel %vm632, %v599, %v631
        %vm634 = vcmask 1045509
        %v635 = vsel %vm634, %v605, %v633
        %vm636 = vcmask 1046534
        %v637 = vsel %vm636, %v611, %v635
        %vm638 = vcmask 1047559
        %v639 = vsel %vm638, %v617, %v637
        %v641 = vadd.f32 %v569, %v639
        %642 = vst [vmem:[#allocation2] sm:$0xff] %v641
        %v643 = vld [vmem:[#allocation3] sm:$0xff]
        %vm644 = vcmask 7168
        %v645 = vsel %vm644, %v489, 0.0
        %v646 = vrot.slane %v645, 4
        %v647 = vadd.f32 %v645, %v646
        %v648 = vrot.slane %v647, 2
        %v649 = vadd.f32 %v647, %v648
        %v650 = vrot.slane %v649, 1
        %v651 = vadd.f32 %v649, %v650
        %v652 = vsel %vm644, %v490, 0.0
        %v653 = vrot.slane %v652, 4
        %v654 = vadd.f32 %v652, %v653
        %v655 = vrot.slane %v654, 2
        %v656 = vadd.f32 %v654, %v655
        %v657 = vrot.slane %v656, 1
        %v658 = vadd.f32 %v656, %v657
        %v659 = vsel %vm644, %v491, 0.0
        %v660 = vrot.slane %v659, 4
        %v661 = vadd.f32 %v659, %v660
        %v662 = vrot.slane %v661, 2
        %v663 = vadd.f32 %v661, %v662
        %v664 = vrot.slane %v663, 1
        %v665 = vadd.f32 %v663, %v664
        %v666 = vsel %vm644, %v492, 0.0
        %v667 = vrot.slane %v666, 4
        %v668 = vadd.f32 %v666, %v667
        %v669 = vrot.slane %v668, 2
        %v670 = vadd.f32 %v668, %v669
        %v671 = vrot.slane %v670, 1
        %v672 = vadd.f32 %v670, %v671
        %v673 = vsel %vm644, %v493, 0.0
        %v674 = vrot.slane %v673, 4
        %v675 = vadd.f32 %v673, %v674
        %v676 = vrot.slane %v675, 2
        %v677 = vadd.f32 %v675, %v676
        %v678 = vrot.slane %v677, 1
        %v679 = vadd.f32 %v677, %v678
        %v680 = vsel %vm644, %v494, 0.0
        %v681 = vrot.slane %v680, 4
        %v682 = vadd.f32 %v680, %v681
        %v683 = vrot.slane %v682, 2
        %v684 = vadd.f32 %v682, %v683
        %v685 = vrot.slane %v684, 1
        %v686 = vadd.f32 %v684, %v685
        %v687 = vsel %vm644, %v495, 0.0
        %v688 = vrot.slane %v687, 4
        %v689 = vadd.f32 %v687, %v688
        %v690 = vrot.slane %v689, 2
        %v691 = vadd.f32 %v689, %v690
        %v692 = vrot.slane %v691, 1
        %v693 = vadd.f32 %v691, %v692
        %v694 = vsel %vm644, %v496, 0.0
        %v695 = vrot.slane %v694, 4
        %v696 = vadd.f32 %v694, %v695
        %v697 = vrot.slane %v696, 2
        %v698 = vadd.f32 %v696, %v697
        %v699 = vrot.slane %v698, 1
        %v700 = vadd.f32 %v698, %v699
        %v709 = vsel %vm626, %v658, %v651
        %v710 = vsel %vm628, %v665, %v709
        %v711 = vsel %vm630, %v672, %v710
        %v712 = vsel %vm632, %v679, %v711
        %v713 = vsel %vm634, %v686, %v712
        %v714 = vsel %vm636, %v693, %v713
        %v715 = vsel %vm638, %v700, %v714
        %v717 = vadd.f32 %v643, %v715
        %718 = vst.msk [vmem:[#allocation3] sm:$0xff] %vm644, %v717
        %p719 = scmp.eq.s32.totalorder %s21, 1
        // Predicated region
        $region159: #{tpu_custom_call.1} parent=141 // pred_check
          %p720 = pneg %p719
        $region160: #{tpu_custom_call.1} parent=141 // pred_check_branch
          %722 = sbr.rel (%p720) target = $region162
        $region161: #{tpu_custom_call.1} parent=141 // pred_region
          %v723 = vld [vmem:[#allocation2] sm:$0xff]
          %v724 = vld [vmem:[#allocation3] sm:$0xff]
          %v725 = vadd.f32 %v724, 1e-06
          %727 = vset.pattern.permute.xlu0 0
          %728 = vperm.xlu0 %727, %v725
          %v729 = vpop.permute.xlu0 %728
          %v731 = vrcp.pop %v729
          %v732 = vmul.f32 %v729, %v731
          %v733 = vsub.f32 1.0, %v732
          %v734 = vmul.f32 %v731, %v733
          %v735 = vadd.f32 %v731, %v734
          %vm736 = vweird.f32 %v729
          %vm737 = vweird.f32 %v731
          %vm738 = vmor %vm736, %vm737
          %v739 = vsel %vm738, %v731, %v735
          %v740 = vand.u32 2147483647, %v729
          %vm741 = vcmp.eq.f32.partialorder %v740, 8.507059e+37
          %v742 = vand.u32 %v729, 2147483648
          %v743 = vor.u32 1.1754944e-38, %v742
          %v744 = vsel %vm741, %v743, %v739
          %v745 = vmul.f32 %v723, %v744
          %v746 = vld [vmem:[%s3] sm:$0xff]
          %v747 = vld [vmem:[%s3 + $0x8] sm:$0xff]
          %v748 = vld [vmem:[%s3 + $0x10] sm:$0xff]
          %v749 = vld [vmem:[%s3 + $0x18] sm:$0xff]
          %v750 = vld [vmem:[%s3 + $0x20] sm:$0xff]
          %v751 = vld [vmem:[%s3 + $0x28] sm:$0xff]
          %v752 = vld [vmem:[%s3 + $0x30] sm:$0xff]
          %v753 = vld [vmem:[%s3 + $0x38] sm:$0xff]
          %v754 = vld [vmem:[%s3 + $0x40] sm:$0xff]
          %v755 = vld [vmem:[%s3 + $0x48] sm:$0xff]
          %v756 = vld [vmem:[%s3 + $0x50] sm:$0xff]
          %v757 = vld [vmem:[%s3 + $0x58] sm:$0xff]
          %v758 = vld [vmem:[%s3 + $0x60] sm:$0xff]
          %v759 = vld [vmem:[%s3 + $0x68] sm:$0xff]
          %v760 = vld [vmem:[%s3 + $0x70] sm:$0xff]
          %v761 = vld [vmem:[%s3 + $0x78] sm:$0xff]
          %v762 = vld [vmem:[%s4] sm:$0x1]
          %v764 = vperm.slane %v762, 0
          %766 = vmatpush.msra.mxu0 %v761
          %767 = vmatpush.msra.mxu0 %v760
          %768 = vmatpush.msra.mxu0 %v759
          %769 = vmatpush.msra.mxu0 %v758
          %770 = vmatpush.msra.mxu0 %v757
          %771 = vmatpush.msra.mxu0 %v756
          %772 = vmatpush.msra.mxu0 %v755
          %773 = vmatpush.msra.mxu0 %v754
          %774 = vmatpush.msra.mxu0 %v753
          %775 = vmatpush.msra.mxu0 %v752
          %776 = vmatpush.msra.mxu0 %v751
          %777 = vmatpush.msra.mxu0 %v750
          %778 = vmatpush.msra.mxu0 %v749
          %779 = vmatpush.msra.mxu0 %v748
          %780 = vmatpush.msra.mxu0 %v747
          %781 = vmatpush.msra.mxu0 %v746
          %782 = vmatmul.f32.gmra.mxu0 %v745
          %v783 = vpop.f32.mrf.mxu0
          %v784 = vadd.f32 %v764, %v783
          %785 = vdwg.mxu0
          %vm786 = vcmask 15360
          %787 = vst.msk [vmem:[%s481] sm:$0xff] %vm786, %v784
        $region162: #{tpu_custom_call.1} parent=141 // pred_fallthru
          _
        %p788 = scmp.lt.s32.totalorder %s20, 0
        %s789 = scalar_select %p788, %s20, 0
        %s790 = smul.addr %s789, 8
        %s791 = scalar_lea.vmem %s5, %s790
        // Predicated region
        $region163: #{tpu_custom_call.1} parent=141 // pred_check
          %p792 = pneg %p172
        $region164: #{tpu_custom_call.1} parent=141 // pred_check_branch
          %794 = sbr.rel (%p792) target = $region166
        $region165: #{tpu_custom_call.1} parent=141 // pred_region
          _
        $region166: #{tpu_custom_call.1} parent=141 // pred_fallthru
          _
        // Predicated region
        $region167: #{tpu_custom_call.1} parent=141 // pred_check
          %p795 = pneg %p172
        $region168: #{tpu_custom_call.1} parent=141 // pred_check_branch
          %797 = sbr.rel (%p795) target = $region170
        $region169: #{tpu_custom_call.1} parent=141 // pred_region
          %p798 = scmp.lt.s32.totalorder %s20, 0
          %s799 = scalar_select %p798, %s20, 0
          %s800 = smul.addr %s799, 8
          %s801 = scalar_lea.vmem %s5, %s800
        $region170: #{tpu_custom_call.1} parent=141 // pred_fallthru
          _
      $region142: #{tpu_custom_call.1} parent=5 // pred_fallthru
        _
      %p802 = scmp.le.s32.totalorder 2, %s11
      // Predicated region
      $region171: #{tpu_custom_call.1} parent=5 // pred_check
        %p803 = pneg %p802
      $region172: #{tpu_custom_call.1} parent=5 // pred_check_branch
        %805 = sbr.rel (%p803) target = $region174
      $region173: #{tpu_custom_call.1} parent=5 // pred_region
        %s806 = ssub.s32 %s11, 2
      $region174: #{tpu_custom_call.1} parent=5 // pred_fallthru
        _
    $region6: #{tpu_custom_call.1} parent=1 // loop_footer
      %s15 = sadd.s32 1, %s11
    $region7: #{tpu_custom_call.1} parent=1 // loop_footer_branch
      %10 = sbr.rel target = $region3
    $region8: #{tpu_custom_call.1} parent=1 // loop_exit
      _

</llo_original>
